<compile_context>
chip_gen: v7x
topology: tpu7x:2x2x1
jax: 0.10.0
libtpu: 0.0.40
codegen_flags: <defaults>
</compile_context>

<pallas_src>
import numpy as np
import jax
import jax.numpy as jnp
from jax.experimental import pallas as pl
from jax.experimental.pallas import tpu as pltpu

SIZE = 32             # data.size
C = 3
NUM_CLASSES = 10      # data.num_classes
ROWS, LANES = 24, 128 # 3*32*32 = 3072 = 24 x 128


# ------------------------------------------------------------------ trigger (badnets)
def badnets(size, a=1.0):
    pattern_x, pattern_y = (2, 8)
    mask = np.zeros([size, size, 3])
    mask[pattern_x:pattern_y, pattern_x:pattern_y, :] = 1.0 * a
    np.random.seed(0)
    pattern = np.random.rand(size, size, 3)
    pattern = np.round(pattern * 255.0)
    return mask, pattern


def flat(x_chw):
    """CHW float32 image-shaped tensor -> (24, 128) lane-dense slab."""
    return jnp.reshape(x_chw, (ROWS, LANES))


# Run-constants from badnets(seed=0) — computed once on host, baked at trace time.
_MASK_NP, _PATTERN_NP = badnets(SIZE)
_MASK = np.transpose(_MASK_NP, (2, 0, 1)).astype(np.float32)                     # CHW
_PATTERN = np.transpose(_PATTERN_NP / 255.0, (2, 0, 1)).astype(np.float32)       # CHW
_MAX_RADIUS = ((1.0 - np.round(_PATTERN) - _PATTERN) * _MASK).astype(np.float32)
_MAX_NORM = float(np.sqrt(np.sum(_MAX_RADIUS.astype(np.float64) ** 2)))
INV_MAX_NORM = float(1.0 / max(_MAX_NORM, 1e-12))    # compile-time scalar (eps-guarded)


def _sumsq_11(x):
    """Sum of squares of a (R, L) slab -> (1, 1), via lane-then-sublane reductions."""
    s = jnp.sum(x * x, axis=0, keepdims=True)        # (1, L)  sublane reduce
    return jnp.sum(s, axis=1, keepdims=True)         # (1, 1)  lane reduce


# ------------------------------------------------------------------ fused kernel
def fused_step_kernel(consts_ref, var_ref, logits_ref, target_ref, slabs_ref, scal_ref):
    # Run-constant slabs (one stacked DMA): mask / pattern / max_radius.
    mask = consts_ref[0]
    pattern = consts_ref[1]
    max_radius = consts_ref[2]
    # Per-step slabs (one stacked DMA): inputs / upper_perturbations.
    x = var_ref[0]
    pert = var_ref[1]

    # Perturbations.add_trigger
    base = (1.0 - mask) * x + pattern * mask                  # x*(1-m) + p*m
    poison = jnp.clip(base + pert, 0.0, 1.0)

    # loss regularizer: ||max_radius - upper_perturbations||
    reg_norm = jnp.sqrt(_sumsq_11(max_radius - pert))         # (1, 1)

    # Perturbations.robustness_index (1/||max_radius|| baked as a trace-time float)
    eff = poison - base
    upper_radius = jnp.sqrt(_sumsq_11(eff))                   # (1, 1)
    spec = (1.0 - upper_radius * INV_MAX_NORM) * 100.0        # (1, 1)

    # upper_perturbations.clamp_(-trigger, mask - trigger), trigger = pattern*mask
    trigger = pattern * mask
    clamped = jnp.clip(pert, -trigger, mask - trigger)

    # Perturbations.dynamic: change = normalize(logits)[target] - max(normalize(logits)[others])
    logits = logits_ref[...]                                  # (1, NUM_CLASSES)
    sumsq = jnp.sum(logits * logits, axis=-1, keepdims=True)  # (1, 1)
    # exact F.normalize (eps=1e-12 on the norm  <=>  eps^2 on the sum of squares)
    norm_pre = logits * jax.lax.rsqrt(jnp.maximum(sumsq, 1e-24))
    target = target_ref[0]                                    # int32 scalar from SMEM
    cls = jax.lax.broadcasted_iota(jnp.int32, (1, NUM_CLASSES), 1)
    is_target = cls == target
    target_pre = jnp.sum(jnp.where(is_target, norm_pre, 0.0), axis=-1, keepdims=True)
    # finite sentinel (not -inf) so padded lanes can never leak NaN/-inf
    other_max = jnp.max(jnp.where(is_target, -1e30, norm_pre), axis=-1, keepdims=True)
    change = target_pre - other_max                           # (1, 1)

    # Consolidated stores: one stacked lane-dense slab output + one (1,128) scalar row.
    slabs_ref[0] = poison
    slabs_ref[1] = clamped
    lane = jax.lax.broadcasted_iota(jnp.int32, (1, LANES), 1)
    row = jnp.where(lane == 0, reg_norm, 0.0)
    row = jnp.where(lane == 1, spec, row)
    row = jnp.where(lane == 2, change, row)
    scal_ref[...] = row


# ------------------------------------------------------------------ wrapper (single fused call)
_VMEM = pl.BlockSpec(memory_space=pltpu.MemorySpace.VMEM)   # whole array, single-buffered
_SMEM = pl.BlockSpec(memory_space=pltpu.MemorySpace.SMEM)


@jax.jit
def perturbation_step(consts, inputs_f, pert_f, logits, target, Lambda):
    varying = jnp.stack([inputs_f, pert_f])                  # (2, 24, 128), per-step stack
    slabs, scal = pl.pallas_call(
        fused_step_kernel,
        out_shape=(
            jax.ShapeDtypeStruct((2, ROWS, LANES), jnp.float32),  # [poison, clamped]
            jax.ShapeDtypeStruct((1, LANES), jnp.float32),        # reg_norm, spec, change
        ),
        in_specs=[_VMEM, _VMEM, _VMEM, _SMEM],
        out_specs=(_VMEM, _VMEM),
    )(consts, varying, logits, target)

    poison_f = slabs[0]
    clamped_f = slabs[1]       # carried forward explicitly (no buffer donation)
    reg_norm = scal[0, 0]
    spec = scal[0, 1]
    change = scal[0, 2]
    # Scalar bookkeeping as in Perturbations.loss / dynamic (stays on device):
    loss_regularizer = Lambda * reg_norm
    new_Lambda = jnp.maximum(Lambda + change, 0.0)
    return poison_f, clamped_f, reg_norm, spec, change, loss_regularizer, new_Lambda


# ------------------------------------------------------------------ pure-JAX reference
def reference_step(mask_f, pattern_f, max_radius_f, inputs_f, pert_f, logits, target):
    base = (1.0 - mask_f) * inputs_f + pattern_f * mask_f
    poison = jnp.clip(base + pert_f, 0.0, 1.0)
    reg_norm = jnp.sqrt(jnp.sum((max_radius_f - pert_f) ** 2))
    eff = poison - base
    spec = (1.0 - jnp.sqrt(jnp.sum(eff * eff)) * INV_MAX_NORM) * 100.0
    trigger = pattern_f * mask_f
    clamped = jnp.clip(pert_f, -trigger, mask_f - trigger)
    denom = jnp.sqrt(jnp.sum(logits * logits, axis=-1, keepdims=True))
    norm_pre = logits / jnp.maximum(denom, 1e-12)
    onehot = jax.nn.one_hot(target, NUM_CLASSES, dtype=jnp.float32)
    target_pre = jnp.sum(norm_pre * onehot)
    other_max = jnp.max(jnp.where(onehot == 0.0, norm_pre, -jnp.inf))
    change = target_pre - other_max
    return poison, clamped, reg_norm, spec, change


# ------------------------------------------------------------------ main
if __name__ == "__main__":
    key = jax.random.PRNGKey(0)
    k_in, k_pert, k_logit = jax.random.split(key, 3)

    # Constant slabs (mask, pattern, max_radius) stacked ONCE on host.
    mask_f = flat(jnp.asarray(_MASK))
    pattern_f = flat(jnp.asarray(_PATTERN))
    max_radius_f = flat(jnp.asarray(_MAX_RADIUS))
    consts = jnp.stack([mask_f, pattern_f, max_radius_f])            # (3, 24, 128)

    Lambda = jnp.float32(0.1)

    # Batch size 1, as in the module.
    inputs = jax.random.uniform(k_in, (1, C, SIZE, SIZE), dtype=jnp.float32)
    # upper_perturbations starts at zeros in the module; use small noise so the
    # clamp / norm paths are exercised non-trivially.
    upper_pert = 0.01 * jax.random.normal(k_pert, (C, SIZE, SIZE), dtype=jnp.float32)
    # Stand-in logits (the real ones come from ResNet18 -- see TODO above).
    logits = jax.random.normal(k_logit, (1, NUM_CLASSES), dtype=jnp.float32)
    target_poison = jnp.array([1], dtype=jnp.int32)                  # data.target

    inputs_f = flat(inputs[0])
    pert_f = flat(upper_pert)

    # Pure-JAX reference (computed first; the kernel donates nothing either way).
    ref = reference_step(mask_f, pattern_f, max_radius_f, inputs_f, pert_f,
                         logits, target_poison)
    ref = jax.block_until_ready(ref)

    # --- one perturbation "step" worth of tensor math, fused into one kernel ---
    outs = perturbation_step(consts, inputs_f, pert_f, logits, target_poison, Lambda)
    outs = jax.block_until_ready(outs)
    poison_f, clamped_f, reg_norm, spec, change, loss_regularizer, new_Lambda = outs

    # Correctness checks against the reference.
    r_poison, r_clamped, r_reg, r_spec, r_change = ref
    np.testing.assert_allclose(np.asarray(poison_f), np.asarray(r_poison), rtol=1e-5, atol=1e-5)
    np.testing.assert_allclose(np.asarray(clamped_f), np.asarray(r_clamped), rtol=1e-5, atol=1e-5)
    np.testing.assert_allclose(float(reg_norm), float(r_reg), rtol=1e-5, atol=1e-4)
    np.testing.assert_allclose(float(spec), float(r_spec), rtol=1e-4, atol=1e-3)
    np.testing.assert_allclose(float(change), float(r_change), rtol=1e-5, atol=1e-5)

    inputs_poison_upper = jnp.reshape(poison_f, (1, C, SIZE, SIZE))  # back to NCHW
    assert inputs_poison_upper.shape == (1, C, SIZE, SIZE)
    assert bool(jnp.all(jnp.isfinite(poison_f)))
    assert bool(jnp.all(jnp.isfinite(clamped_f)))
    assert bool(jnp.isfinite(spec))
    assert bool(jnp.isfinite(new_Lambda))

    print("KERNEL_OK")
</pallas_src>

<mosaic_0001>
module attributes {stable_mosaic.version = 11 : i64} {
  func.func @fused_step_kernel(%arg0: memref<3x24x128xf32, #tpu.memory_space<vmem>>, %arg1: memref<2x24x128xf32, #tpu.memory_space<vmem>>, %arg2: memref<1x10xf32, #tpu.memory_space<vmem>>, %arg3: memref<1xi32, #tpu.memory_space<smem>>, %arg4: memref<2x24x128xf32, #tpu.memory_space<vmem>>, %arg5: memref<1x128xf32, #tpu.memory_space<vmem>>) attributes {dimension_semantics = [], scalar_prefetch = 0 : i64, scratch_operands = 0 : i64, tpu.core_type = #tpu.core_type<tc>} {
    %c0 = arith.constant 0 : index
    %c0_0 = arith.constant 0 : index
    %c0_1 = arith.constant 0 : index
    %0 = vector.load %arg0[%c0, %c0_0, %c0_1] : memref<3x24x128xf32, #tpu.memory_space<vmem>>, vector<1x24x128xf32>
    %1 = vector.shape_cast %0 : vector<1x24x128xf32> to vector<24x128xf32>
    %c1 = arith.constant 1 : index
    %c0_2 = arith.constant 0 : index
    %c0_3 = arith.constant 0 : index
    %2 = vector.load %arg0[%c1, %c0_2, %c0_3] : memref<3x24x128xf32, #tpu.memory_space<vmem>>, vector<1x24x128xf32>
    %3 = vector.shape_cast %2 : vector<1x24x128xf32> to vector<24x128xf32>
    %c2 = arith.constant 2 : index
    %c0_4 = arith.constant 0 : index
    %c0_5 = arith.constant 0 : index
    %4 = vector.load %arg0[%c2, %c0_4, %c0_5] : memref<3x24x128xf32, #tpu.memory_space<vmem>>, vector<1x24x128xf32>
    %5 = vector.shape_cast %4 : vector<1x24x128xf32> to vector<24x128xf32>
    %c0_6 = arith.constant 0 : index
    %c0_7 = arith.constant 0 : index
    %c0_8 = arith.constant 0 : index
    %6 = vector.load %arg1[%c0_6, %c0_7, %c0_8] : memref<2x24x128xf32, #tpu.memory_space<vmem>>, vector<1x24x128xf32>
    %7 = vector.shape_cast %6 : vector<1x24x128xf32> to vector<24x128xf32>
    %c1_9 = arith.constant 1 : index
    %c0_10 = arith.constant 0 : index
    %c0_11 = arith.constant 0 : index
    %8 = vector.load %arg1[%c1_9, %c0_10, %c0_11] : memref<2x24x128xf32, #tpu.memory_space<vmem>>, vector<1x24x128xf32>
    %9 = vector.shape_cast %8 : vector<1x24x128xf32> to vector<24x128xf32>
    %cst = arith.constant 1.000000e+00 : f32
    %10 = vector.broadcast %cst : f32 to vector<24x128xf32>
    %11 = arith.subf %10, %1 : vector<24x128xf32>
    %12 = arith.mulf %11, %7 : vector<24x128xf32>
    %13 = arith.mulf %3, %1 : vector<24x128xf32>
    %14 = arith.addf %12, %13 : vector<24x128xf32>
    %15 = arith.addf %14, %9 : vector<24x128xf32>
    %cst_12 = arith.constant 0.000000e+00 : f32
    %cst_13 = arith.constant 1.000000e+00 : f32
    %16 = vector.broadcast %cst_12 : f32 to vector<24x128xf32>
    %17 = arith.maximumf %16, %15 : vector<24x128xf32>
    %18 = vector.broadcast %cst_13 : f32 to vector<24x128xf32>
    %19 = arith.minimumf %18, %17 : vector<24x128xf32>
    %20 = arith.subf %5, %9 : vector<24x128xf32>
    %21 = arith.mulf %20, %20 : vector<24x128xf32>
    %cst_14 = arith.constant dense<0.000000e+00> : vector<128xf32>
    %22 = vector.multi_reduction <add>, %21, %cst_14 [0] : vector<24x128xf32> to vector<128xf32>
    %23 = vector.shape_cast %22 : vector<128xf32> to vector<1x128xf32>
    %cst_15 = arith.constant dense<0.000000e+00> : vector<1xf32>
    %24 = vector.multi_reduction <add>, %23, %cst_15 [1] : vector<1x128xf32> to vector<1xf32>
    %25 = vector.shape_cast %24 : vector<1xf32> to vector<1x1xf32>
    %26 = math.sqrt %25 : vector<1x1xf32>
    %27 = arith.subf %19, %14 : vector<24x128xf32>
    %28 = arith.mulf %27, %27 : vector<24x128xf32>
    %cst_16 = arith.constant dense<0.000000e+00> : vector<128xf32>
    %29 = vector.multi_reduction <add>, %28, %cst_16 [0] : vector<24x128xf32> to vector<128xf32>
    %30 = vector.shape_cast %29 : vector<128xf32> to vector<1x128xf32>
    %cst_17 = arith.constant dense<0.000000e+00> : vector<1xf32>
    %31 = vector.multi_reduction <add>, %30, %cst_17 [1] : vector<1x128xf32> to vector<1xf32>
    %32 = vector.shape_cast %31 : vector<1xf32> to vector<1x1xf32>
    %33 = math.sqrt %32 : vector<1x1xf32>
    %cst_18 = arith.constant 0.123738565 : f32
    %34 = vector.broadcast %cst_18 : f32 to vector<1x1xf32>
    %35 = arith.mulf %33, %34 : vector<1x1xf32>
    %cst_19 = arith.constant 1.000000e+00 : f32
    %36 = vector.broadcast %cst_19 : f32 to vector<1x1xf32>
    %37 = arith.subf %36, %35 : vector<1x1xf32>
    %cst_20 = arith.constant 1.000000e+02 : f32
    %38 = vector.broadcast %cst_20 : f32 to vector<1x1xf32>
    %39 = arith.mulf %37, %38 : vector<1x1xf32>
    %40 = arith.mulf %3, %1 : vector<24x128xf32>
    %cst_21 = arith.constant 0.000000e+00 : f32
    %41 = vector.broadcast %cst_21 : f32 to vector<24x128xf32>
    %42 = arith.subf %41, %40 : vector<24x128xf32>
    %43 = arith.subf %1, %40 : vector<24x128xf32>
    %44 = arith.maximumf %42, %9 : vector<24x128xf32>
    %45 = arith.minimumf %43, %44 : vector<24x128xf32>
    %c0_22 = arith.constant 0 : index
    %c0_23 = arith.constant 0 : index
    %46 = vector.load %arg2[%c0_22, %c0_23] : memref<1x10xf32, #tpu.memory_space<vmem>>, vector<1x10xf32>
    %47 = arith.mulf %46, %46 : vector<1x10xf32>
    %cst_24 = arith.constant dense<0.000000e+00> : vector<1xf32>
    %48 = vector.multi_reduction <add>, %47, %cst_24 [1] : vector<1x10xf32> to vector<1xf32>
    %49 = vector.shape_cast %48 : vector<1xf32> to vector<1x1xf32>
    %cst_25 = arith.constant 1.000000e-24 : f32
    %50 = vector.broadcast %cst_25 : f32 to vector<1x1xf32>
    %51 = arith.maximumf %49, %50 : vector<1x1xf32>
    %52 = math.rsqrt %51 : vector<1x1xf32>
    %53 = vector.broadcast %52 : vector<1x1xf32> to vector<1x10xf32>
    %54 = arith.mulf %46, %53 : vector<1x10xf32>
    %c0_26 = arith.constant 0 : index
    %55 = memref.load %arg3[%c0_26] : memref<1xi32, #tpu.memory_space<smem>>
    %56 = tpu.iota {dimensions = array<i32: 1>} : vector<1x10xi32>
    %57 = vector.broadcast %55 : i32 to vector<1x10xi32>
    %58 = arith.cmpi eq, %56, %57 : vector<1x10xi32>
    %cst_27 = arith.constant 0.000000e+00 : f32
    %59 = vector.broadcast %cst_27 : f32 to vector<1x10xf32>
    %60 = arith.select %58, %54, %59 : vector<1x10xi1>, vector<1x10xf32>
    %cst_28 = arith.constant dense<0.000000e+00> : vector<1xf32>
    %61 = vector.multi_reduction <add>, %60, %cst_28 [1] : vector<1x10xf32> to vector<1xf32>
    %62 = vector.shape_cast %61 : vector<1xf32> to vector<1x1xf32>
    %cst_29 = arith.constant -1.000000e+30 : f32
    %63 = vector.broadcast %cst_29 : f32 to vector<1x10xf32>
    %64 = arith.select %58, %63, %54 : vector<1x10xi1>, vector<1x10xf32>
    %cst_30 = arith.constant dense<0xFF800000> : vector<1xf32>
    %65 = vector.multi_reduction <maximumf>, %64, %cst_30 [1] : vector<1x10xf32> to vector<1xf32>
    %66 = vector.shape_cast %65 : vector<1xf32> to vector<1x1xf32>
    %67 = arith.subf %62, %66 : vector<1x1xf32>
    %c0_31 = arith.constant 0 : index
    %c0_32 = arith.constant 0 : index
    %c0_33 = arith.constant 0 : index
    %68 = vector.load %arg4[%c0_31, %c0_32, %c0_33] : memref<2x24x128xf32, #tpu.memory_space<vmem>>, vector<1x24x128xf32>
    %69 = vector.shape_cast %68 : vector<1x24x128xf32> to vector<24x128xf32>
    %70 = vector.shape_cast %19 : vector<24x128xf32> to vector<1x24x128xf32>
    tpu.vector_store %arg4[%c0_31, %c0_32, %c0_33], %70 {strides = array<i32>} : memref<2x24x128xf32, #tpu.memory_space<vmem>>, vector<1x24x128xf32>,
    %c1_34 = arith.constant 1 : index
    %c0_35 = arith.constant 0 : index
    %c0_36 = arith.constant 0 : index
    %71 = vector.load %arg4[%c1_34, %c0_35, %c0_36] : memref<2x24x128xf32, #tpu.memory_space<vmem>>, vector<1x24x128xf32>
    %72 = vector.shape_cast %71 : vector<1x24x128xf32> to vector<24x128xf32>
    %73 = vector.shape_cast %45 : vector<24x128xf32> to vector<1x24x128xf32>
    tpu.vector_store %arg4[%c1_34, %c0_35, %c0_36], %73 {strides = array<i32>} : memref<2x24x128xf32, #tpu.memory_space<vmem>>, vector<1x24x128xf32>,
    %74 = tpu.iota {dimensions = array<i32: 1>} : vector<1x128xi32>
    %c0_i32 = arith.constant 0 : i32
    %75 = vector.broadcast %c0_i32 : i32 to vector<1x128xi32>
    %76 = arith.cmpi eq, %74, %75 : vector<1x128xi32>
    %cst_37 = arith.constant 0.000000e+00 : f32
    %77 = vector.shape_cast %26 : vector<1x1xf32> to vector<1x1xf32>
    %78 = vector.broadcast %77 : vector<1x1xf32> to vector<1x128xf32>
    %79 = vector.broadcast %cst_37 : f32 to vector<1x128xf32>
    %80 = arith.select %76, %78, %79 : vector<1x128xi1>, vector<1x128xf32>
    %c1_i32 = arith.constant 1 : i32
    %81 = vector.broadcast %c1_i32 : i32 to vector<1x128xi32>
    %82 = arith.cmpi eq, %74, %81 : vector<1x128xi32>
    %83 = vector.shape_cast %39 : vector<1x1xf32> to vector<1x1xf32>
    %84 = vector.broadcast %83 : vector<1x1xf32> to vector<1x128xf32>
    %85 = arith.select %82, %84, %80 : vector<1x128xi1>, vector<1x128xf32>
    %c2_i32 = arith.constant 2 : i32
    %86 = vector.broadcast %c2_i32 : i32 to vector<1x128xi32>
    %87 = arith.cmpi eq, %74, %86 : vector<1x128xi32>
    %88 = vector.shape_cast %67 : vector<1x1xf32> to vector<1x1xf32>
    %89 = vector.broadcast %88 : vector<1x1xf32> to vector<1x128xf32>
    %90 = arith.select %87, %89, %85 : vector<1x128xi1>, vector<1x128xf32>
    %c0_38 = arith.constant 0 : index
    %c0_39 = arith.constant 0 : index
    %91 = vector.load %arg5[%c0_38, %c0_39] : memref<1x128xf32, #tpu.memory_space<vmem>>, vector<1x128xf32>
    tpu.vector_store %arg5[%c0_38, %c0_39], %90 {strides = array<i32>} : memref<1x128xf32, #tpu.memory_space<vmem>>, vector<1x128xf32>,
    return
  }
}

</mosaic_0001>

<llo_original>
// kernel: perturbation_step.1
$region0: #{perturbation_step.1}
  #allocation0 [shape = 'u32[]', space=smem, size = 0x4, offset = 0x4, fixed_abs, tag = 'smem constant byte address 0x4 - core index']
  #allocation1 [shape = 'u32[144,128]{1,0:T(1,128)}', space=vmem, size = 0x12000, scoped, tag = 'internal scratch']
  #allocation2 [shape = 's32[1]{0:T(128)S(6)}', space=smem, size = 0x200, scoped, tag = 'scoped memory for perturbation_step.1']
  %s0 = inlined_call_operand.vmem [shape: f32[3,24,128], index: 0, kind: input, shape index: {}]
  %s1 = inlined_call_operand.vmem [shape: f32[2,24,128], index: 1, kind: input, shape index: {}]
  %s2 = inlined_call_operand.vmem [shape: f32[1,10], index: 2, kind: input, shape index: {}]
  %s3 = inlined_call_operand.<no memory space> [shape: s32[1], index: 3, kind: input, shape index: {}]
  %s4 = inlined_call_operand.vmem [shape: f32[2,24,128], index: 4, kind: output, shape index: {0}]
  %s5 = inlined_call_operand.vmem [shape: f32[1,128], index: 5, kind: output, shape index: {1}]
  %6 = xla_tuple %s4, %s5
  %s7 = sld [smem:[#allocation0]]
  $region34: #{perturbation_step.1} parent=0
    _
  %s9 = ssub.s32 1, %s7
  %s10 = scalar_select 0, %s9, %s7
  %11 = sst [smem:[#allocation2]] %s3
  // Predicated region
  $region2: #{perturbation_step.1} parent=0 // pred_check
    _
  $region3: #{perturbation_step.1} parent=0 // pred_check_branch
    %13 = sbr.rel (0) target = $region5
  $region4: #{perturbation_step.1} parent=0 // pred_region
    _
  $region5: #{perturbation_step.1} parent=0 // pred_fallthru
    _
  // Predicated region
  $region6: #{perturbation_step.1} parent=0 // pred_check
    _
  $region7: #{perturbation_step.1} parent=0 // pred_check_branch
    %15 = sbr.rel (0) target = $region9
  $region8: #{perturbation_step.1} parent=0 // pred_region
    _
  $region9: #{perturbation_step.1} parent=0 // pred_fallthru
    _
  // Predicated region
  $region10: #{perturbation_step.1} parent=0 // pred_check
    _
  $region11: #{perturbation_step.1} parent=0 // pred_check_branch
    %17 = sbr.rel (0) target = $region13
  $region12: #{perturbation_step.1} parent=0 // pred_region
    _
  $region13: #{perturbation_step.1} parent=0 // pred_fallthru
    _
  // Predicated region
  $region14: #{perturbation_step.1} parent=0 // pred_check
    _
  $region15: #{perturbation_step.1} parent=0 // pred_check_branch
    %19 = sbr.rel (0) target = $region17
  $region16: #{perturbation_step.1} parent=0 // pred_region
    _
  $region17: #{perturbation_step.1} parent=0 // pred_fallthru
    _
  %v20 = vld [vmem:[%s0] sm:$0xff]
  %v21 = vld [vmem:[%s0 + $0x8] sm:$0xff]
  %v22 = vld [vmem:[%s0 + $0x10] sm:$0xff]
  %s23 = scalar_lea.vmem %s0, 24
  %v24 = vld [vmem:[%s23] sm:$0xff]
  %v25 = vld [vmem:[%s23 + $0x8] sm:$0xff]
  %v26 = vld [vmem:[%s23 + $0x10] sm:$0xff]
  %s27 = scalar_lea.vmem %s0, 48
  %v28 = vld [vmem:[%s27] sm:$0xff]
  %v29 = vld [vmem:[%s27 + $0x8] sm:$0xff]
  %v30 = vld [vmem:[%s27 + $0x10] sm:$0xff]
  %v31 = vld [vmem:[%s1] sm:$0xff]
  %v32 = vld [vmem:[%s1 + $0x8] sm:$0xff]
  %v33 = vld [vmem:[%s1 + $0x10] sm:$0xff]
  %s34 = scalar_lea.vmem %s1, 24
  %v35 = vld [vmem:[%s34] sm:$0xff]
  %v36 = vld [vmem:[%s34 + $0x8] sm:$0xff]
  %v37 = vld [vmem:[%s34 + $0x10] sm:$0xff]
  %v38 = vsub.f32 1.0, %v20
  %v39 = vsub.f32 1.0, %v21
  %v40 = vsub.f32 1.0, %v22
  %v41 = vmul.f32 %v38, %v31
  %v42 = vmul.f32 %v39, %v32
  %v43 = vmul.f32 %v40, %v33
  %v44 = vmul.f32 %v24, %v20
  %v45 = vmul.f32 %v25, %v21
  %v46 = vmul.f32 %v26, %v22
  %v47 = vadd.f32 %v41, %v44
  %v48 = vadd.f32 %v42, %v45
  %v49 = vadd.f32 %v43, %v46
  %v50 = vadd.f32 %v47, %v35
  %v51 = vadd.f32 %v48, %v36
  %v52 = vadd.f32 %v49, %v37
  %v53 = vmax.f32 %v50, 0.0
  %v54 = vmax.f32 %v51, 0.0
  %v55 = vmax.f32 %v52, 0.0
  %v56 = vmin.f32 %v53, 1.0
  %v57 = vmin.f32 %v54, 1.0
  %v58 = vmin.f32 %v55, 1.0
  %v59 = vsub.f32 %v28, %v35
  %v60 = vsub.f32 %v29, %v36
  %v61 = vsub.f32 %v30, %v37
  %v62 = vmul.f32 %v59, %v59
  %v63 = vmul.f32 %v60, %v60
  %v64 = vmul.f32 %v61, %v61
  %v65 = vadd.f32 %v62, %v63
  %v66 = vadd.f32 %v65, %v64
  %v67 = vrot.slane %v66, 4
  %v68 = vadd.f32 %v66, %v67
  %v69 = vrot.slane %v68, 2
  %v70 = vadd.f32 %v68, %v69
  %v71 = vrot.slane %v70, 1
  %v72 = vadd.f32 %v70, %v71
  %73 = vadd.xlane.f32.xlu0 %v72
  %v74 = vpop.xlane.xlu0 %73
  %v75 = vrsqrt.pop %v74
  %v76 = vmul.f32 %v74, %v75
  %vm77 = vcmp.eq.f32.partialorder %v74, inf
  %v78 = vsel %vm77, %v74, %v76
  %vm79 = vcmp.eq.f32.partialorder %v74, 0.0
  %v80 = vand.u32 %v74, 2147483648
  %v81 = vsel %vm79, %v80, %v78
  %v82 = vsub.f32 %v56, %v47
  %v83 = vsub.f32 %v57, %v48
  %v84 = vsub.f32 %v58, %v49
  %v85 = vmul.f32 %v82, %v82
  %v86 = vmul.f32 %v83, %v83
  %v87 = vmul.f32 %v84, %v84
  %v88 = vadd.f32 %v85, %v86
  %v89 = vadd.f32 %v88, %v87
  %v90 = vrot.slane %v89, 4
  %v91 = vadd.f32 %v89, %v90
  %v92 = vrot.slane %v91, 2
  %v93 = vadd.f32 %v91, %v92
  %v94 = vrot.slane %v93, 1
  %v95 = vadd.f32 %v93, %v94
  %96 = vadd.xlane.f32.xlu0 %v95
  %v97 = vpop.xlane.xlu0 %96
  %v98 = vrsqrt.pop %v97
  %v99 = vmul.f32 %v97, %v98
  %vm100 = vcmp.eq.f32.partialorder %v97, inf
  %v101 = vsel %vm100, %v97, %v99
  %vm102 = vcmp.eq.f32.partialorder %v97, 0.0
  %v103 = vand.u32 %v97, 2147483648
  %v104 = vsel %vm102, %v103, %v101
  %v105 = vmul.f32 %v104, 0.123738565
  %v106 = vsub.f32 1.0, %v105
  %v107 = vmul.f32 %v106, 100.0
  %v108 = vsub.f32 0.0, %v44
  %v109 = vsub.f32 0.0, %v45
  %v110 = vsub.f32 0.0, %v46
  %v111 = vsub.f32 %v20, %v44
  %v112 = vsub.f32 %v21, %v45
  %v113 = vsub.f32 %v22, %v46
  %v114 = vmax.f32 %v108, %v35
  %v115 = vmax.f32 %v109, %v36
  %v116 = vmax.f32 %v110, %v37
  %v117 = vmin.f32 %v111, %v114
  %v118 = vmin.f32 %v112, %v115
  %v119 = vmin.f32 %v113, %v116
  %v120 = vld [vmem:[%s2] sm:$0x1]
  %v121 = vmul.f32 %v120, %v120
  %vm122 = vcmask 73728
  %v123 = vsel %vm122, %v121, 0.0
  %124 = vadd.xlane.f32.xlu0 %v123
  %v125 = vpop.xlane.xlu0 %124
  %v126 = vmax.f32 %v125, 1e-24
  %v127 = vrsqrt.pop %v126
  %v128 = vmul.f32 %v120, %v127
  %s129 = sld [smem:[#allocation2]]
  %v130 = vlaneseq
  %v131 = vand.u32 %v130, 127
  %v132 = vstv %s129
  %vm133 = vcmp.eq.s32.totalorder %v131, %v132
  %v134 = vsel %vm133, %v128, 0.0
  %v135 = vsel %vm122, %v134, 0.0
  %136 = vadd.xlane.f32.xlu0 %v135
  %v137 = vpop.xlane.xlu0 %136
  %v138 = vsel %vm133, -1e+30, %v128
  %v139 = vsel %vm122, %v138, -inf
  %140 = vmax.xlane.f32.xlu0 %v139
  %v141 = vpop.xlane.xlu0 %140
  %v142 = vsub.f32 %v137, %v141
  %143 = vst [vmem:[%s4] sm:$0xff] %v56
  %144 = vst [vmem:[%s4 + $0x8] sm:$0xff] %v57
  %145 = vst [vmem:[%s4 + $0x10] sm:$0xff] %v58
  %s146 = scalar_lea.vmem %s4, 24
  %147 = vst [vmem:[%s146] sm:$0xff] %v117
  %148 = vst [vmem:[%s146 + $0x8] sm:$0xff] %v118
  %149 = vst [vmem:[%s146 + $0x10] sm:$0xff] %v119
  %vm150 = vcmp.eq.s32.totalorder %v131, 0
  %v151 = vsel %vm150, %v81, 0.0
  %vm152 = vcmp.eq.s32.totalorder %v131, 1
  %v153 = vsel %vm152, %v107, %v151
  %vm154 = vcmp.eq.s32.totalorder %v131, 2
  %v155 = vsel %vm154, %v142, %v153
  %156 = vst [vmem:[%s5] sm:$0x1] %v155
  // Predicated region
  $region18: #{perturbation_step.1} parent=0 // pred_check
    _
  $region19: #{perturbation_step.1} parent=0 // pred_check_branch
    %158 = sbr.rel (0) target = $region21
  $region20: #{perturbation_step.1} parent=0 // pred_region
    _
  $region21: #{perturbation_step.1} parent=0 // pred_fallthru
    _
  // Predicated region
  $region22: #{perturbation_step.1} parent=0 // pred_check
    _
  $region23: #{perturbation_step.1} parent=0 // pred_check_branch
    %160 = sbr.rel (0) target = $region25
  $region24: #{perturbation_step.1} parent=0 // pred_region
    _
  $region25: #{perturbation_step.1} parent=0 // pred_fallthru
    _
  // Predicated region
  $region26: #{perturbation_step.1} parent=0 // pred_check
    _
  $region27: #{perturbation_step.1} parent=0 // pred_check_branch
    %162 = sbr.rel (0) target = $region29
  $region28: #{perturbation_step.1} parent=0 // pred_region
    _
  $region29: #{perturbation_step.1} parent=0 // pred_fallthru
    _
  // Predicated region
  $region30: #{perturbation_step.1} parent=0 // pred_check
    _
  $region31: #{perturbation_step.1} parent=0 // pred_check_branch
    %164 = sbr.rel (0) target = $region33
  $region32: #{perturbation_step.1} parent=0 // pred_region
    _
  $region33: #{perturbation_step.1} parent=0 // pred_fallthru
    _

</llo_original>
